<compile_context>
chip_gen: v7x
topology: tpu7x:2x2x1
jax: 0.10.0
libtpu: 0.0.40
codegen_flags: <defaults>
</compile_context>

<pallas_src>
import jax
import jax.numpy as jnp
from jax.experimental import pallas as pl
from jax.experimental.pallas import tpu as pltpu

EPS = 1e-5
MATMUL_DTYPE = jnp.bfloat16          # MXU-native; also used for the HBM intermediate y.
                                     # Set jnp.float32 for bit-closer numerics.
VMEM_LIMIT_BYTES = 32 * 1024 * 1024  # safe on v5e/v6e (128 MiB) and v7x (64 MiB)
BLOCK_TARGET_BYTES = 2 * 1024 * 1024 # ~1-4 MiB per grid-step block target


def _pick_batch_block(n, bytes_per_sample, target=BLOCK_TARGET_BYTES):
    """Largest divisor of n whose per-step block stays under the target size."""
    best = 1
    for b in range(1, n + 1):
        if n % b == 0 and b * bytes_per_sample <= target:
            best = b
    return best


def make_conv_stats_kernel(K, W, Wout, S_out, Cin, Cout, B_blk):
    """Pass 1: conv as one big-contraction MXU matmul per sample + partial BN stats."""

    def kernel(x_ref, w_ref, y_ref, sum_ref, sq_ref, slab_ref):
        # x_ref   : [B_blk, Cin, S_pad]     (matmul dtype) flat H*W spatial on lanes
        # w_ref   : [Cout, Cin*K*K]         (matmul dtype) columns ordered (kh, kw, cin)
        # y_ref   : [B_blk, Cout, S_out]    (matmul dtype) pre-BN conv output
        # sum_ref : [1, Cout, 1]  f32 per-step partial sum   (indexed by grid step)
        # sq_ref  : [1, Cout, 1]  f32 per-step partial sumsq (indexed by grid step)
        # slab_ref: [Cin*K*K, S_out] VMEM scratch (staged im2col block)
        lane = jax.lax.broadcasted_iota(jnp.int32, (Cout, S_out), 1)
        valid = (lane % W) < Wout   # lanes with flat idx % W >= Wout straddle image rows
        s_acc = jnp.zeros((Cout, 1), jnp.float32)
        q_acc = jnp.zeros((Cout, 1), jnp.float32)

        for b in range(B_blk):                        # static, unrolled
            # Stage K*K lane-shifted slabs -> [Cin*K*K, S_out] im2col block in VMEM.
            for kh in range(K):
                for kw in range(K):
                    tap = kh * K + kw
                    slab_ref[pl.ds(tap * Cin, Cin), :] = (
                        x_ref[b, :, pl.ds(kh * W + kw, S_out)])
            # One MXU pass, contraction = Cin*K*K, f32 accumulation.
            acc = jnp.dot(w_ref[...], slab_ref[...],
                          preferred_element_type=jnp.float32)      # [Cout, S_out]
            y_ref[b] = acc.astype(y_ref.dtype)
            # Partial BatchNorm statistics from the f32 accumulator (masked lanes out).
            s_acc = s_acc + jnp.sum(jnp.where(valid, acc, 0.0), axis=1, keepdims=True)
            q_acc = q_acc + jnp.sum(jnp.where(valid, acc * acc, 0.0),
                                    axis=1, keepdims=True)

        sum_ref[0] = s_acc
        sq_ref[0] = q_acc

    return kernel


def make_bn_relu_compact_kernel(W, Wout, Hout, inv_cnt, eps):
    """Pass 2: in-kernel BN fold (from partial stats) + ReLU + compaction to Hout*Wout."""

    def kernel(y_ref, psum_ref, psq_ref, g_ref, b_ref, o_ref):
        # y_ref : [B_blk, Cout, Hout*W]     (matmul dtype)
        # psum_ref, psq_ref : [G, Cout, 1]  f32 partial stats from all pass-1 steps
        # g_ref, b_ref      : [Cout, 1]     f32 BN affine params
        # o_ref : [B_blk, Cout, Hout*Wout]  f32 compact output
        psum = jnp.sum(psum_ref[...], axis=0)                       # [Cout, 1]
        psq = jnp.sum(psq_ref[...], axis=0)
        mean = psum * inv_cnt
        var = jnp.maximum(psq * inv_cnt - mean * mean, 0.0)         # biased batch var
        scale = g_ref[...] * jax.lax.rsqrt(var + eps)               # [Cout, 1]
        shift = b_ref[...] - mean * scale

        val = jnp.maximum(y_ref[...].astype(jnp.float32) * scale + shift, 0.0)
        # Drop the (W - Wout) garbage columns per row: static lane-slice copies.
        for h in range(Hout):
            o_ref[:, :, pl.ds(h * Wout, Wout)] = val[:, :, h * W:h * W + Wout]

    return kernel


def conv_norm_relu(x, weight, gamma, beta, eps=EPS, mm_dtype=MATMUL_DTYPE):
    """Conv2d(k, stride=1, pad=0, bias=False) -> BatchNorm2d (training stats) -> ReLU.

    x: [N, Cin, H, W] (NCHW), weight: [Cout, Cin, K, K] (OIHW), gamma/beta: [Cout].
    Returns [N, Cout, Hout, Wout] float32.
    """
    N, Cin, H, W = x.shape
    Cout, Cin_w, K, K2 = weight.shape
    assert Cin_w == Cin and K == K2
    Hout, Wout = H - K + 1, W - K + 1

    S_out = Hout * W                               # flat rows kept per sample
    S_pad = -(-(H * W + K - 1) // 8) * 8           # room for the largest tap shift

    mm_bytes = jnp.dtype(mm_dtype).itemsize
    per_sample = (Cin * S_pad + 2 * Cout * S_out) * mm_bytes + Cout * Hout * Wout * 4
    B_blk = _pick_batch_block(N, per_sample)
    G = N // B_blk

    # Channels-first, flattened + padded spatial on the lane axis (no HBM im2col blow-up);
    # the matmul-dtype cast halves the x DMA when bf16.
    x_pad = jnp.pad(x.reshape(N, Cin, H * W).astype(mm_dtype),
                    ((0, 0), (0, 0), (0, S_pad - H * W)))
    # Weights as [Cout, (kh, kw, cin)] so columns line up with the staged slab rows.
    w_cat = jnp.transpose(weight, (0, 2, 3, 1)).reshape(Cout, K * K * Cin).astype(mm_dtype)

    conv_kernel = make_conv_stats_kernel(K, W, Wout, S_out, Cin, Cout, B_blk)
    y, psum, psq = pl.pallas_call(
        conv_kernel,
        out_shape=(
            jax.ShapeDtypeStruct((N, Cout, S_out), mm_dtype),     # bf16 intermediate
            jax.ShapeDtypeStruct((G, Cout, 1), jnp.float32),      # partial sums
            jax.ShapeDtypeStruct((G, Cout, 1), jnp.float32),      # partial sumsqs
        ),
        grid=(G,),
        in_specs=[
            pl.BlockSpec((B_blk, Cin, S_pad), lambda i: (i, 0, 0)),
            pl.BlockSpec((Cout, K * K * Cin), lambda i: (0, 0)),
        ],
        out_specs=(
            pl.BlockSpec((B_blk, Cout, S_out), lambda i: (i, 0, 0)),
            pl.BlockSpec((1, Cout, 1), lambda i: (i, 0, 0)),
            pl.BlockSpec((1, Cout, 1), lambda i: (i, 0, 0)),
        ),
        scratch_shapes=[pltpu.VMEM((K * K * Cin, S_out), mm_dtype)],
        compiler_params=pltpu.CompilerParams(
            dimension_semantics=("parallel",),     # per-step partial stats -> no races
            vmem_limit_bytes=VMEM_LIMIT_BYTES),
    )(x_pad, w_cat)

    inv_cnt = 1.0 / float(N * Hout * Wout)
    bn_kernel = make_bn_relu_compact_kernel(W, Wout, Hout, inv_cnt, float(eps))
    out_flat = pl.pallas_call(
        bn_kernel,
        out_shape=jax.ShapeDtypeStruct((N, Cout, Hout * Wout), jnp.float32),
        grid=(G,),
        in_specs=[
            pl.BlockSpec((B_blk, Cout, S_out), lambda i: (i, 0, 0)),
            pl.BlockSpec((G, Cout, 1), lambda i: (0, 0, 0)),
            pl.BlockSpec((G, Cout, 1), lambda i: (0, 0, 0)),
            pl.BlockSpec((Cout, 1), lambda i: (0, 0)),
            pl.BlockSpec((Cout, 1), lambda i: (0, 0)),
        ],
        out_specs=pl.BlockSpec((B_blk, Cout, Hout * Wout), lambda i: (i, 0, 0)),
        compiler_params=pltpu.CompilerParams(
            dimension_semantics=("parallel",),
            vmem_limit_bytes=VMEM_LIMIT_BYTES),
    )(y, psum, psq,
      gamma.reshape(Cout, 1).astype(jnp.float32),
      beta.reshape(Cout, 1).astype(jnp.float32))

    # Output is already compact; trailing-dim split is a free (bitcast) reshape.
    return out_flat.reshape(N, Cout, Hout, Wout)


def reference(x, weight, gamma, beta, eps=EPS):
    y = jax.lax.conv_general_dilated(
        x, weight, window_strides=(1, 1), padding="VALID",
        dimension_numbers=("NCHW", "OIHW", "NCHW"))
    mean = jnp.mean(y, axis=(0, 2, 3), keepdims=True)
    var = jnp.mean((y - mean) ** 2, axis=(0, 2, 3), keepdims=True)
    y = (y - mean) * jax.lax.rsqrt(var + eps)
    y = y * gamma.reshape(1, -1, 1, 1) + beta.reshape(1, -1, 1, 1)
    return jnp.maximum(y, 0.0)


if __name__ == "__main__":
    key = jax.random.PRNGKey(0)
    k_x, k_w = jax.random.split(key)

    N, Cin, H, W = 2, 4, 16, 16
    Cout, K = 8, 3  # ConvNormRelu defaults: kernel_size=3, stride=1, padding=0, batch-norm, relu

    x = jax.random.normal(k_x, (N, Cin, H, W), dtype=jnp.float32)
    weight = jax.random.normal(k_w, (Cout, Cin, K, K), dtype=jnp.float32) * 0.1
    gamma = jnp.ones((Cout,), dtype=jnp.float32)   # PyTorch BatchNorm2d default affine init
    beta = jnp.zeros((Cout,), dtype=jnp.float32)

    out = conv_norm_relu(x, weight, gamma, beta)
    jax.block_until_ready(out)

    ref = reference(x, weight, gamma, beta)
    assert out.shape == (N, Cout, H - K + 1, W - K + 1)
    # bf16 matmul inputs + bf16 intermediate vs an all-f32 reference -> looser tolerance.
    tol = 1e-4 if MATMUL_DTYPE == jnp.float32 else 3e-2
    assert jnp.allclose(out, ref, rtol=tol, atol=tol), "mismatch vs reference"

    print("KERNEL_OK")
</pallas_src>

<mosaic_0001>
module attributes {stable_mosaic.version = 11 : i64} {
  func.func @kernel(%arg0: i32, %arg1: memref<2x4x264xbf16, #tpu.memory_space<vmem>>, %arg2: memref<8x36xbf16, #tpu.memory_space<vmem>>, %arg3: memref<2x8x224xbf16, #tpu.memory_space<vmem>>, %arg4: memref<1x8x1xf32, #tpu.memory_space<vmem>>, %arg5: memref<1x8x1xf32, #tpu.memory_space<vmem>>, %arg6: memref<36x224xbf16, #tpu.memory_space<vmem>>) attributes {dimension_semantics = [#tpu.dimension_semantics<parallel>], iteration_bounds = array<i64: 1>, scalar_prefetch = 0 : i64, scratch_operands = 1 : i64, tpu.core_type = #tpu.core_type<tc>, window_params = [{transform_indices = @transform_0, window_bounds = array<i64: 2, 4, 264>}, {pipeline_mode = #tpu.pipeline_mode<synchronous>, transform_indices = @transform_1, window_bounds = array<i64: 8, 36>}, {transform_indices = @transform_2, window_bounds = array<i64: 2, 8, 224>}, {transform_indices = @transform_3, window_bounds = array<i64: 1, 8, 1>}, {transform_indices = @transform_4, window_bounds = array<i64: 1, 8, 1>}]} {
    %0 = tpu.iota {dimensions = array<i32: 1>} : vector<8x224xi32>
    %c16_i32 = arith.constant 16 : i32
    %c0_i32 = arith.constant 0 : i32
    %1 = arith.cmpi eq, %c16_i32, %c0_i32 : i32
    %c1_i32 = arith.constant 1 : i32
    %2 = arith.select %1, %c1_i32, %c16_i32 : i32
    %3 = vector.broadcast %2 : i32 to vector<8x224xi32>
    %4 = arith.remsi %0, %3 : vector<8x224xi32>
    %c0_i32_0 = arith.constant 0 : i32
    %5 = vector.broadcast %c0_i32_0 : i32 to vector<8x224xi32>
    %6 = arith.cmpi ne, %4, %5 : vector<8x224xi32>
    %c0_i32_1 = arith.constant 0 : i32
    %7 = vector.broadcast %c0_i32_1 : i32 to vector<8x224xi32>
    %8 = arith.cmpi slt, %4, %7 : vector<8x224xi32>
    %c0_i32_2 = arith.constant 0 : i32
    %9 = arith.cmpi slt, %2, %c0_i32_2 : i32
    %10 = vector.broadcast %9 : i1 to vector<8x224xi1>
    %11 = vector.broadcast %10 : vector<8x224xi1> to vector<8x224xi1>
    %12 = arith.xori %8, %11 : vector<8x224xi1>
    %13 = arith.andi %12, %6 : vector<8x224xi1>
    %14 = vector.broadcast %2 : i32 to vector<8x224xi32>
    %15 = arith.addi %4, %14 : vector<8x224xi32>
    %16 = arith.select %13, %15, %4 : vector<8x224xi1>, vector<8x224xi32>
    %c14_i32 = arith.constant 14 : i32
    %17 = vector.broadcast %c14_i32 : i32 to vector<8x224xi32>
    %18 = arith.cmpi slt, %16, %17 : vector<8x224xi32>
    %cst = arith.constant 0.000000e+00 : f32
    %19 = vector.broadcast %cst : f32 to vector<8x1xf32>
    %cst_3 = arith.constant 0.000000e+00 : f32
    %20 = vector.broadcast %cst_3 : f32 to vector<8x1xf32>
    %c0 = arith.constant 0 : index
    %c0_4 = arith.constant 0 : index
    %c0_5 = arith.constant 0 : index
    %21 = vector.load %arg1[%c0, %c0_4, %c0_5] : memref<2x4x264xbf16, #tpu.memory_space<vmem>>, vector<1x4x224xbf16>
    %22 = vector.shape_cast %21 : vector<1x4x224xbf16> to vector<4x224xbf16>
    %c0_6 = arith.constant 0 : index
    %c0_7 = arith.constant 0 : index
    %23 = vector.load %arg6[%c0_6, %c0_7] : memref<36x224xbf16, #tpu.memory_space<vmem>>, vector<4x224xbf16>
    tpu.vector_store %arg6[%c0_6, %c0_7], %22 {strides = array<i32>} : memref<36x224xbf16, #tpu.memory_space<vmem>>, vector<4x224xbf16>,
    %c0_8 = arith.constant 0 : index
    %c0_9 = arith.constant 0 : index
    %c1 = arith.constant 1 : index
    %24 = vector.load %arg1[%c0_8, %c0_9, %c1] : memref<2x4x264xbf16, #tpu.memory_space<vmem>>, vector<1x4x224xbf16>
    %25 = vector.shape_cast %24 : vector<1x4x224xbf16> to vector<4x224xbf16>
    %c4 = arith.constant 4 : index
    %c0_10 = arith.constant 0 : index
    %26 = vector.load %arg6[%c4, %c0_10] : memref<36x224xbf16, #tpu.memory_space<vmem>>, vector<4x224xbf16>
    tpu.vector_store %arg6[%c4, %c0_10], %25 {strides = array<i32>} : memref<36x224xbf16, #tpu.memory_space<vmem>>, vector<4x224xbf16>,
    %c0_11 = arith.constant 0 : index
    %c0_12 = arith.constant 0 : index
    %c2 = arith.constant 2 : index
    %27 = vector.load %arg1[%c0_11, %c0_12, %c2] : memref<2x4x264xbf16, #tpu.memory_space<vmem>>, vector<1x4x224xbf16>
    %28 = vector.shape_cast %27 : vector<1x4x224xbf16> to vector<4x224xbf16>
    %c8 = arith.constant 8 : index
    %c0_13 = arith.constant 0 : index
    %29 = vector.load %arg6[%c8, %c0_13] : memref<36x224xbf16, #tpu.memory_space<vmem>>, vector<4x224xbf16>
    tpu.vector_store %arg6[%c8, %c0_13], %28 {strides = array<i32>} : memref<36x224xbf16, #tpu.memory_space<vmem>>, vector<4x224xbf16>,
    %c0_14 = arith.constant 0 : index
    %c0_15 = arith.constant 0 : index
    %c16 = arith.constant 16 : index
    %30 = vector.load %arg1[%c0_14, %c0_15, %c16] : memref<2x4x264xbf16, #tpu.memory_space<vmem>>, vector<1x4x224xbf16>
    %31 = vector.shape_cast %30 : vector<1x4x224xbf16> to vector<4x224xbf16>
    %c12 = arith.constant 12 : index
    %c0_16 = arith.constant 0 : index
    %32 = vector.load %arg6[%c12, %c0_16] : memref<36x224xbf16, #tpu.memory_space<vmem>>, vector<4x224xbf16>
    tpu.vector_store %arg6[%c12, %c0_16], %31 {strides = array<i32>} : memref<36x224xbf16, #tpu.memory_space<vmem>>, vector<4x224xbf16>,
    %c0_17 = arith.constant 0 : index
    %c0_18 = arith.constant 0 : index
    %c17 = arith.constant 17 : index
    %33 = vector.load %arg1[%c0_17, %c0_18, %c17] : memref<2x4x264xbf16, #tpu.memory_space<vmem>>, vector<1x4x224xbf16>
    %34 = vector.shape_cast %33 : vector<1x4x224xbf16> to vector<4x224xbf16>
    %c16_19 = arith.constant 16 : index
    %c0_20 = arith.constant 0 : index
    %35 = vector.load %arg6[%c16_19, %c0_20] : memref<36x224xbf16, #tpu.memory_space<vmem>>, vector<4x224xbf16>
    tpu.vector_store %arg6[%c16_19, %c0_20], %34 {strides = array<i32>} : memref<36x224xbf16, #tpu.memory_space<vmem>>, vector<4x224xbf16>,
    %c0_21 = arith.constant 0 : index
    %c0_22 = arith.constant 0 : index
    %c18 = arith.constant 18 : index
    %36 = vector.load %arg1[%c0_21, %c0_22, %c18] : memref<2x4x264xbf16, #tpu.memory_space<vmem>>, vector<1x4x224xbf16>
    %37 = vector.shape_cast %36 : vector<1x4x224xbf16> to vector<4x224xbf16>
    %c20 = arith.constant 20 : index
    %c0_23 = arith.constant 0 : index
    %38 = vector.load %arg6[%c20, %c0_23] : memref<36x224xbf16, #tpu.memory_space<vmem>>, vector<4x224xbf16>
    tpu.vector_store %arg6[%c20, %c0_23], %37 {strides = array<i32>} : memref<36x224xbf16, #tpu.memory_space<vmem>>, vector<4x224xbf16>,
    %c0_24 = arith.constant 0 : index
    %c0_25 = arith.constant 0 : index
    %c32 = arith.constant 32 : index
    %39 = vector.load %arg1[%c0_24, %c0_25, %c32] : memref<2x4x264xbf16, #tpu.memory_space<vmem>>, vector<1x4x224xbf16>
    %40 = vector.shape_cast %39 : vector<1x4x224xbf16> to vector<4x224xbf16>
    %c24 = arith.constant 24 : index
    %c0_26 = arith.constant 0 : index
    %41 = vector.load %arg6[%c24, %c0_26] : memref<36x224xbf16, #tpu.memory_space<vmem>>, vector<4x224xbf16>
    tpu.vector_store %arg6[%c24, %c0_26], %40 {strides = array<i32>} : memref<36x224xbf16, #tpu.memory_space<vmem>>, vector<4x224xbf16>,
    %c0_27 = arith.constant 0 : index
    %c0_28 = arith.constant 0 : index
    %c33 = arith.constant 33 : index
    %42 = vector.load %arg1[%c0_27, %c0_28, %c33] : memref<2x4x264xbf16, #tpu.memory_space<vmem>>, vector<1x4x224xbf16>
    %43 = vector.shape_cast %42 : vector<1x4x224xbf16> to vector<4x224xbf16>
    %c28 = arith.constant 28 : index
    %c0_29 = arith.constant 0 : index
    %44 = vector.load %arg6[%c28, %c0_29] : memref<36x224xbf16, #tpu.memory_space<vmem>>, vector<4x224xbf16>
    tpu.vector_store %arg6[%c28, %c0_29], %43 {strides = array<i32>} : memref<36x224xbf16, #tpu.memory_space<vmem>>, vector<4x224xbf16>,
    %c0_30 = arith.constant 0 : index
    %c0_31 = arith.constant 0 : index
    %c34 = arith.constant 34 : index
    %45 = vector.load %arg1[%c0_30, %c0_31, %c34] : memref<2x4x264xbf16, #tpu.memory_space<vmem>>, vector<1x4x224xbf16>
    %46 = vector.shape_cast %45 : vector<1x4x224xbf16> to vector<4x224xbf16>
    %c32_32 = arith.constant 32 : index
    %c0_33 = arith.constant 0 : index
    %47 = vector.load %arg6[%c32_32, %c0_33] : memref<36x224xbf16, #tpu.memory_space<vmem>>, vector<4x224xbf16>
    tpu.vector_store %arg6[%c32_32, %c0_33], %46 {strides = array<i32>} : memref<36x224xbf16, #tpu.memory_space<vmem>>, vector<4x224xbf16>,
    %c0_34 = arith.constant 0 : index
    %c0_35 = arith.constant 0 : index
    %48 = vector.load %arg2[%c0_34, %c0_35] : memref<8x36xbf16, #tpu.memory_space<vmem>>, vector<8x36xbf16>
    %c0_36 = arith.constant 0 : index
    %c0_37 = arith.constant 0 : index
    %49 = vector.load %arg6[%c0_36, %c0_37] : memref<36x224xbf16, #tpu.memory_space<vmem>>, vector<36x224xbf16>
    %cst_38 = arith.constant dense<0.000000e+00> : vector<8x224xf32>
    %50 = tpu.matmul %48, %49, %cst_38 {dimension_numbers = #tpu.dot_dimension_numbers<[1], [0], [0], [1], [0, 0, 1, 1], [], []>} : vector<8x36xbf16>, vector<36x224xbf16>, vector<8x224xf32> -> vector<8x224xf32>
    %51 = arith.truncf %50 : vector<8x224xf32> to vector<8x224xbf16>
    %c0_39 = arith.constant 0 : index
    %c0_40 = arith.constant 0 : index
    %c0_41 = arith.constant 0 : index
    %52 = vector.load %arg3[%c0_39, %c0_40, %c0_41] : memref<2x8x224xbf16, #tpu.memory_space<vmem>>, vector<1x8x224xbf16>
    %53 = vector.shape_cast %52 : vector<1x8x224xbf16> to vector<8x224xbf16>
    %54 = vector.shape_cast %51 : vector<8x224xbf16> to vector<1x8x224xbf16>
    tpu.vector_store %arg3[%c0_39, %c0_40, %c0_41], %54 {strides = array<i32>} : memref<2x8x224xbf16, #tpu.memory_space<vmem>>, vector<1x8x224xbf16>,
    %cst_42 = arith.constant 0.000000e+00 : f32
    %55 = vector.broadcast %cst_42 : f32 to vector<8x224xf32>
    %56 = arith.select %18, %50, %55 : vector<8x224xi1>, vector<8x224xf32>
    %cst_43 = arith.constant dense<0.000000e+00> : vector<8xf32>
    %57 = vector.multi_reduction <add>, %56, %cst_43 [1] : vector<8x224xf32> to vector<8xf32>
    %58 = vector.shape_cast %57 : vector<8xf32> to vector<8x1xf32>
    %59 = arith.addf %19, %58 : vector<8x1xf32>
    %60 = arith.mulf %50, %50 : vector<8x224xf32>
    %cst_44 = arith.constant 0.000000e+00 : f32
    %61 = vector.broadcast %cst_44 : f32 to vector<8x224xf32>
    %62 = arith.select %18, %60, %61 : vector<8x224xi1>, vector<8x224xf32>
    %cst_45 = arith.constant dense<0.000000e+00> : vector<8xf32>
    %63 = vector.multi_reduction <add>, %62, %cst_45 [1] : vector<8x224xf32> to vector<8xf32>
    %64 = vector.shape_cast %63 : vector<8xf32> to vector<8x1xf32>
    %65 = arith.addf %20, %64 : vector<8x1xf32>
    %c1_46 = arith.constant 1 : index
    %c0_47 = arith.constant 0 : index
    %c0_48 = arith.constant 0 : index
    %66 = vector.load %arg1[%c1_46, %c0_47, %c0_48] : memref<2x4x264xbf16, #tpu.memory_space<vmem>>, vector<1x4x224xbf16>
    %67 = vector.shape_cast %66 : vector<1x4x224xbf16> to vector<4x224xbf16>
    %c0_49 = arith.constant 0 : index
    %c0_50 = arith.constant 0 : index
    %68 = vector.load %arg6[%c0_49, %c0_50] : memref<36x224xbf16, #tpu.memory_space<vmem>>, vector<4x224xbf16>
    tpu.vector_store %arg6[%c0_49, %c0_50], %67 {strides = array<i32>} : memref<36x224xbf16, #tpu.memory_space<vmem>>, vector<4x224xbf16>,
    %c1_51 = arith.constant 1 : index
    %c0_52 = arith.constant 0 : index
    %c1_53 = arith.constant 1 : index
    %69 = vector.load %arg1[%c1_51, %c0_52, %c1_53] : memref<2x4x264xbf16, #tpu.memory_space<vmem>>, vector<1x4x224xbf16>
    %70 = vector.shape_cast %69 : vector<1x4x224xbf16> to vector<4x224xbf16>
    %c4_54 = arith.constant 4 : index
    %c0_55 = arith.constant 0 : index
    %71 = vector.load %arg6[%c4_54, %c0_55] : memref<36x224xbf16, #tpu.memory_space<vmem>>, vector<4x224xbf16>
    tpu.vector_store %arg6[%c4_54, %c0_55], %70 {strides = array<i32>} : memref<36x224xbf16, #tpu.memory_space<vmem>>, vector<4x224xbf16>,
    %c1_56 = arith.constant 1 : index
    %c0_57 = arith.constant 0 : index
    %c2_58 = arith.constant 2 : index
    %72 = vector.load %arg1[%c1_56, %c0_57, %c2_58] : memref<2x4x264xbf16, #tpu.memory_space<vmem>>, vector<1x4x224xbf16>
    %73 = vector.shape_cast %72 : vector<1x4x224xbf16> to vector<4x224xbf16>
    %c8_59 = arith.constant 8 : index
    %c0_60 = arith.constant 0 : index
    %74 = vector.load %arg6[%c8_59, %c0_60] : memref<36x224xbf16, #tpu.memory_space<vmem>>, vector<4x224xbf16>
    tpu.vector_store %arg6[%c8_59, %c0_60], %73 {strides = array<i32>} : memref<36x224xbf16, #tpu.memory_space<vmem>>, vector<4x224xbf16>,
    %c1_61 = arith.constant 1 : index
    %c0_62 = arith.constant 0 : index
    %c16_63 = arith.constant 16 : index
    %75 = vector.load %arg1[%c1_61, %c0_62, %c16_63] : memref<2x4x264xbf16, #tpu.memory_space<vmem>>, vector<1x4x224xbf16>
    %76 = vector.shape_cast %75 : vector<1x4x224xbf16> to vector<4x224xbf16>
    %c12_64 = arith.constant 12 : index
    %c0_65 = arith.constant 0 : index
    %77 = vector.load %arg6[%c12_64, %c0_65] : memref<36x224xbf16, #tpu.memory_space<vmem>>, vector<4x224xbf16>
    tpu.vector_store %arg6[%c12_64, %c0_65], %76 {strides = array<i32>} : memref<36x224xbf16, #tpu.memory_space<vmem>>, vector<4x224xbf16>,
    %c1_66 = arith.constant 1 : index
    %c0_67 = arith.constant 0 : index
    %c17_68 = arith.constant 17 : index
    %78 = vector.load %arg1[%c1_66, %c0_67, %c17_68] : memref<2x4x264xbf16, #tpu.memory_space<vmem>>, vector<1x4x224xbf16>
    %79 = vector.shape_cast %78 : vector<1x4x224xbf16> to vector<4x224xbf16>
    %c16_69 = arith.constant 16 : index
    %c0_70 = arith.constant 0 : index
    %80 = vector.load %arg6[%c16_69, %c0_70] : memref<36x224xbf16, #tpu.memory_space<vmem>>, vector<4x224xbf16>
    tpu.vector_store %arg6[%c16_69, %c0_70], %79 {strides = array<i32>} : memref<36x224xbf16, #tpu.memory_space<vmem>>, vector<4x224xbf16>,
    %c1_71 = arith.constant 1 : index
    %c0_72 = arith.constant 0 : index
    %c18_73 = arith.constant 18 : index
    %81 = vector.load %arg1[%c1_71, %c0_72, %c18_73] : memref<2x4x264xbf16, #tpu.memory_space<vmem>>, vector<1x4x224xbf16>
    %82 = vector.shape_cast %81 : vector<1x4x224xbf16> to vector<4x224xbf16>
    %c20_74 = arith.constant 20 : index
    %c0_75 = arith.constant 0 : index
    %83 = vector.load %arg6[%c20_74, %c0_75] : memref<36x224xbf16, #tpu.memory_space<vmem>>, vector<4x224xbf16>
    tpu.vector_store %arg6[%c20_74, %c0_75], %82 {strides = array<i32>} : memref<36x224xbf16, #tpu.memory_space<vmem>>, vector<4x224xbf16>,
    %c1_76 = arith.constant 1 : index
    %c0_77 = arith.constant 0 : index
    %c32_78 = arith.constant 32 : index
    %84 = vector.load %arg1[%c1_76, %c0_77, %c32_78] : memref<2x4x264xbf16, #tpu.memory_space<vmem>>, vector<1x4x224xbf16>
    %85 = vector.shape_cast %84 : vector<1x4x224xbf16> to vector<4x224xbf16>
    %c24_79 = arith.constant 24 : index
    %c0_80 = arith.constant 0 : index
    %86 = vector.load %arg6[%c24_79, %c0_80] : memref<36x224xbf16, #tpu.memory_space<vmem>>, vector<4x224xbf16>
    tpu.vector_store %arg6[%c24_79, %c0_80], %85 {strides = array<i32>} : memref<36x224xbf16, #tpu.memory_space<vmem>>, vector<4x224xbf16>,
    %c1_81 = arith.constant 1 : index
    %c0_82 = arith.constant 0 : index
    %c33_83 = arith.constant 33 : index
    %87 = vector.load %arg1[%c1_81, %c0_82, %c33_83] : memref<2x4x264xbf16, #tpu.memory_space<vmem>>, vector<1x4x224xbf16>
    %88 = vector.shape_cast %87 : vector<1x4x224xbf16> to vector<4x224xbf16>
    %c28_84 = arith.constant 28 : index
    %c0_85 = arith.constant 0 : index
    %89 = vector.load %arg6[%c28_84, %c0_85] : memref<36x224xbf16, #tpu.memory_space<vmem>>, vector<4x224xbf16>
    tpu.vector_store %arg6[%c28_84, %c0_85], %88 {strides = array<i32>} : memref<36x224xbf16, #tpu.memory_space<vmem>>, vector<4x224xbf16>,
    %c1_86 = arith.constant 1 : index
    %c0_87 = arith.constant 0 : index
    %c34_88 = arith.constant 34 : index
    %90 = vector.load %arg1[%c1_86, %c0_87, %c34_88] : memref<2x4x264xbf16, #tpu.memory_space<vmem>>, vector<1x4x224xbf16>
    %91 = vector.shape_cast %90 : vector<1x4x224xbf16> to vector<4x224xbf16>
    %c32_89 = arith.constant 32 : index
    %c0_90 = arith.constant 0 : index
    %92 = vector.load %arg6[%c32_89, %c0_90] : memref<36x224xbf16, #tpu.memory_space<vmem>>, vector<4x224xbf16>
    tpu.vector_store %arg6[%c32_89, %c0_90], %91 {strides = array<i32>} : memref<36x224xbf16, #tpu.memory_space<vmem>>, vector<4x224xbf16>,
    %c0_91 = arith.constant 0 : index
    %c0_92 = arith.constant 0 : index
    %93 = vector.load %arg2[%c0_91, %c0_92] : memref<8x36xbf16, #tpu.memory_space<vmem>>, vector<8x36xbf16>
    %c0_93 = arith.constant 0 : index
    %c0_94 = arith.constant 0 : index
    %94 = vector.load %arg6[%c0_93, %c0_94] : memref<36x224xbf16, #tpu.memory_space<vmem>>, vector<36x224xbf16>
    %cst_95 = arith.constant dense<0.000000e+00> : vector<8x224xf32>
    %95 = tpu.matmul %93, %94, %cst_95 {dimension_numbers = #tpu.dot_dimension_numbers<[1], [0], [0], [1], [0, 0, 1, 1], [], []>} : vector<8x36xbf16>, vector<36x224xbf16>, vector<8x224xf32> -> vector<8x224xf32>
    %96 = arith.truncf %95 : vector<8x224xf32> to vector<8x224xbf16>
    %c1_96 = arith.constant 1 : index
    %c0_97 = arith.constant 0 : index
    %c0_98 = arith.constant 0 : index
    %97 = vector.load %arg3[%c1_96, %c0_97, %c0_98] : memref<2x8x224xbf16, #tpu.memory_space<vmem>>, vector<1x8x224xbf16>
    %98 = vector.shape_cast %97 : vector<1x8x224xbf16> to vector<8x224xbf16>
    %99 = vector.shape_cast %96 : vector<8x224xbf16> to vector<1x8x224xbf16>
    tpu.vector_store %arg3[%c1_96, %c0_97, %c0_98], %99 {strides = array<i32>} : memref<2x8x224xbf16, #tpu.memory_space<vmem>>, vector<1x8x224xbf16>,
    %cst_99 = arith.constant 0.000000e+00 : f32
    %100 = vector.broadcast %cst_99 : f32 to vector<8x224xf32>
    %101 = arith.select %18, %95, %100 : vector<8x224xi1>, vector<8x224xf32>
    %cst_100 = arith.constant dense<0.000000e+00> : vector<8xf32>
    %102 = vector.multi_reduction <add>, %101, %cst_100 [1] : vector<8x224xf32> to vector<8xf32>
    %103 = vector.shape_cast %102 : vector<8xf32> to vector<8x1xf32>
    %104 = arith.addf %59, %103 : vector<8x1xf32>
    %105 = arith.mulf %95, %95 : vector<8x224xf32>
    %cst_101 = arith.constant 0.000000e+00 : f32
    %106 = vector.broadcast %cst_101 : f32 to vector<8x224xf32>
    %107 = arith.select %18, %105, %106 : vector<8x224xi1>, vector<8x224xf32>
    %cst_102 = arith.constant dense<0.000000e+00> : vector<8xf32>
    %108 = vector.multi_reduction <add>, %107, %cst_102 [1] : vector<8x224xf32> to vector<8xf32>
    %109 = vector.shape_cast %108 : vector<8xf32> to vector<8x1xf32>
    %110 = arith.addf %65, %109 : vector<8x1xf32>
    %c0_103 = arith.constant 0 : index
    %c0_104 = arith.constant 0 : index
    %c0_105 = arith.constant 0 : index
    %111 = vector.load %arg4[%c0_103, %c0_104, %c0_105] : memref<1x8x1xf32, #tpu.memory_space<vmem>>, vector<1x8x1xf32>
    %112 = vector.shape_cast %111 : vector<1x8x1xf32> to vector<8x1xf32>
    %113 = vector.shape_cast %104 : vector<8x1xf32> to vector<1x8x1xf32>
    tpu.vector_store %arg4[%c0_103, %c0_104, %c0_105], %113 {strides = array<i32>} : memref<1x8x1xf32, #tpu.memory_space<vmem>>, vector<1x8x1xf32>,
    %c0_106 = arith.constant 0 : index
    %c0_107 = arith.constant 0 : index
    %c0_108 = arith.constant 0 : index
    %114 = vector.load %arg5[%c0_106, %c0_107, %c0_108] : memref<1x8x1xf32, #tpu.memory_space<vmem>>, vector<1x8x1xf32>
    %115 = vector.shape_cast %114 : vector<1x8x1xf32> to vector<8x1xf32>
    %116 = vector.shape_cast %110 : vector<8x1xf32> to vector<1x8x1xf32>
    tpu.vector_store %arg5[%c0_106, %c0_107, %c0_108], %116 {strides = array<i32>} : memref<1x8x1xf32, #tpu.memory_space<vmem>>, vector<1x8x1xf32>,
    return
  }
  func.func @transform_0(%arg0: i32) -> (i32, i32, i32) {
    %c0_i32 = arith.constant 0 : i32
    %c0_i32_0 = arith.constant 0 : i32
    %c0_i32_1 = arith.constant 0 : i32
    return %arg0, %c0_i32, %c0_i32_0 : i32, i32, i32
  }
  func.func @transform_1(%arg0: i32) -> (i32, i32) {
    %c0_i32 = arith.constant 0 : i32
    %c0_i32_0 = arith.constant 0 : i32
    %c0_i32_1 = arith.constant 0 : i32
    return %c0_i32, %c0_i32_0 : i32, i32
  }
  func.func @transform_2(%arg0: i32) -> (i32, i32, i32) {
    %c0_i32 = arith.constant 0 : i32
    %c0_i32_0 = arith.constant 0 : i32
    %c0_i32_1 = arith.constant 0 : i32
    return %arg0, %c0_i32, %c0_i32_0 : i32, i32, i32
  }
  func.func @transform_3(%arg0: i32) -> (i32, i32, i32) {
    %c0_i32 = arith.constant 0 : i32
    %c0_i32_0 = arith.constant 0 : i32
    %c0_i32_1 = arith.constant 0 : i32
    return %arg0, %c0_i32, %c0_i32_0 : i32, i32, i32
  }
  func.func @transform_4(%arg0: i32) -> (i32, i32, i32) {
    %c0_i32 = arith.constant 0 : i32
    %c0_i32_0 = arith.constant 0 : i32
    %c0_i32_1 = arith.constant 0 : i32
    return %arg0, %c0_i32, %c0_i32_0 : i32, i32, i32
  }
}

</mosaic_0001>

<llo_original>
// kernel: tpu_custom_call.1
$region0: #{tpu_custom_call.1}
  #allocation0 [shape = 'u32[]', space=smem, size = 0x4, offset = 0x4, fixed_abs, tag = 'smem constant byte address 0x4 - core index']
  #allocation1 [shape = 'u32[144,128]{1,0:T(1,128)}', space=vmem, size = 0x12000, scoped, tag = 'internal scratch']
  #allocation2 [shape = 'bf16[36,224]{1,0:T(8,128)(2,1)}', space=vmem, size = 0x5000, scoped, tag = 'scratch operand']
  %s0 = inlined_call_operand.hbm [shape: bf16[2,4,264], index: 0, kind: input, shape index: {}]
  %s1 = inlined_call_operand.hbm [shape: bf16[8,36], index: 1, kind: input, shape index: {}]
  %s2 = inlined_call_operand.hbm [shape: bf16[2,8,224], index: 2, kind: output, shape index: {0}]
  %s3 = inlined_call_operand.vmem [shape: f32[1,8,1], index: 3, kind: output, shape index: {1}]
  %s4 = inlined_call_operand.vmem [shape: f32[1,8,1], index: 4, kind: output, shape index: {2}]
  %5 = xla_tuple %s2, %s3, %s4
  %s6 = sld [smem:[#allocation0]]
  $region42: #{tpu_custom_call.1} parent=0
    _
  %s8 = ssub.s32 1, %s6
  %s9 = scalar_select 0, %s8, %s6
  $region1: #{tpu_custom_call.1} parent=0
    #allocation3 [shape = 'u8[6144]{0}', space=vmem, size = 0x1800, scoped, tag = 'input window, operand 0, single buffered']
    #allocation4 [shape = 's32[1]{0}', space=sflag, size = 0x4, scoped, tag = 'scoped memory for tpu_custom_call.1']
    #allocation5 [shape = 's32[1]{0}', space=sflag, size = 0x4, scoped, tag = 'scoped memory for tpu_custom_call.1']
    #allocation6 [shape = 'u8[2048]{0}', space=vmem, size = 0x800, scoped, tag = 'input window, operand 1, single buffered']
    #allocation7 [shape = 's32[1]{0}', space=sflag, size = 0x4, scoped, tag = 'scoped memory for tpu_custom_call.1']
    #allocation8 [shape = 'u8[8192]{0}', space=vmem, size = 0x2000, scoped, tag = 'output window, operand 0, single buffered']
    %10 = vsyncpa [#allocation4], 0
    %11 = vsyncpa [#allocation7], 0
    %12 = vsyncpa [#allocation5], 0
    // Predicated region
    $region2: #{tpu_custom_call.1} parent=1 // pred_check
      _
    $region3: #{tpu_custom_call.1} parent=1 // pred_check_branch
      %14 = sbr.rel (0) target = $region5
    $region4: #{tpu_custom_call.1} parent=1 // pred_region
      %s16 = ssub.s32 192, 192
      %17 = vsyncadd [#allocation4], %s16
      %s18 = sshll.u32 [#allocation3], 4
      %s19 = int_to_ptr.vmem [resolvable:$true] %s18
      %24 = dma.hbm_to_vmem [thread:$0]  %s0, 192, %s19, [#allocation4], 96, 96, 6
    $region5: #{tpu_custom_call.1} parent=1 // pred_fallthru
      _
    // Predicated region
    $region6: #{tpu_custom_call.1} parent=1 // pred_check
      _
    $region7: #{tpu_custom_call.1} parent=1 // pred_check_branch
      %26 = sbr.rel (0) target = $region9
    $region8: #{tpu_custom_call.1} parent=1 // pred_region
      %s28 = ssub.s32 64, 64
      %29 = vsyncadd [#allocation7], %s28
      %s31 = sshll.u32 [#allocation6], 4
      %s32 = int_to_ptr.vmem [resolvable:$true] %s31
      %34 = dma.hbm_to_vmem [thread:$0]  %s1, 64, %s32, [#allocation7]
    $region9: #{tpu_custom_call.1} parent=1 // pred_fallthru
      _
    // Predicated region
    $region10: #{tpu_custom_call.1} parent=1 // pred_check
      _
    $region11: #{tpu_custom_call.1} parent=1 // pred_check_branch
      %36 = sbr.rel (0) target = $region13
    $region12: #{tpu_custom_call.1} parent=1 // pred_region
      %37 = dma.done [#allocation4], 192
    $region13: #{tpu_custom_call.1} parent=1 // pred_fallthru
      _
    // Predicated region
    $region14: #{tpu_custom_call.1} parent=1 // pred_check
      _
    $region15: #{tpu_custom_call.1} parent=1 // pred_check_branch
      %39 = sbr.rel (0) target = $region17
    $region16: #{tpu_custom_call.1} parent=1 // pred_region
      %40 = dma.done [#allocation7], 64
    $region17: #{tpu_custom_call.1} parent=1 // pred_fallthru
      _
    %v42 = vlaneseq
    %v43 = vand.u32 %v42, 127
    %v44 = vadd.s32 %v43, 128
    %vm45 = vcmp.lt.s32.totalorder %v43, 0
    %v46 = vsub.s32 0, %v43
    %v47 = vsel %vm45, %v46, %v43
    %v48 = vshrl.u32 %v47, 4
    %v49 = vand.u32 %v47, 15
    %v50 = vsub.s32 0, %v49
    %v51 = vsel %vm45, %v50, %v49
    %vm52 = vcmp.lt.s32.totalorder %v44, 0
    %v53 = vsub.s32 0, %v44
    %v54 = vsel %vm52, %v53, %v44
    %v55 = vshrl.u32 %v54, 4
    %v56 = vand.u32 %v54, 15
    %v57 = vsub.s32 0, %v56
    %v58 = vsel %vm52, %v57, %v56
    %vm59 = vcmp.ne.s32.totalorder %v51, 0
    %vm60 = vcmp.ne.s32.totalorder %v58, 0
    %vm61 = vcmp.lt.s32.totalorder %v51, 0
    %vm62 = vcmp.lt.s32.totalorder %v58, 0
    %vm63 = vmand %vm61, %vm59
    %vm64 = vmand %vm62, %vm60
    %v65 = vadd.s32 %v51, 16
    %v66 = vadd.s32 %v58, 16
    %v67 = vsel %vm63, %v65, %v51
    %v68 = vsel %vm64, %v66, %v58
    %vm69 = vcmp.lt.s32.totalorder %v67, 14
    %vm70 = vcmp.lt.s32.totalorder %v68, 14
    %v71 = vld [vmem:[#allocation3] sm:$0xf]
    %v74 = vunpack.c.l.s4 1983009808
    %v75 = vunpack.c.0.s8 %v74
    %v76 = vlaneseq
    %v77 = vshrl.u32 %v76, 7
    %v78 = vsub.s32 %v75, %v77
    %v79 = vrot.slane %v71, %v78
    %vm81 = vcmask 1041408
    %vm82 = vcmask 783364
    %vm83 = vmor %vm82, %vm81
    %84 = vst.msk [vmem:[#allocation2] sm:$0x33] %vm83, %v79
    %v85 = vld [vmem:[#allocation3] sm:$0xf]
    %v87 = vcombine.low %v85, %v85
    %v89 = vunpack.c.l.s4 1983009808
    %v90 = vunpack.c.0.s8 %v89
    %v91 = vlaneseq
    %v92 = vshrl.u32 %v91, 7
    %v93 = vsub.s32 %v90, %v92
    %v94 = vrot.slane %v87, %v93
    %95 = vrot.lane.b32.xlu0 %v94, 127
    %v96 = vpop.permute.xlu0 %95
    %v97 = vrot.slane %v96, 4
    %vm98 = vcmask 1039360
    %v99 = vsel %vm98, %v96, %v97
    %vm101 = vcmask 1043458
    %vm102 = vcmask 785414
    %vm103 = vmor %vm102, %vm101
    %104 = vst.msk [vmem:[#allocation2] sm:$0xcc] %vm103, %v99
    %v105 = vld [vmem:[#allocation3] sm:$0xf]
    %v108 = vunpack.c.l.s4 1983009808
    %v109 = vunpack.c.0.s8 %v108
    %v110 = vlaneseq
    %v111 = vshrl.u32 %v110, 7
    %v112 = vsub.s32 %v109, %v111
    %v113 = vrot.slane %v105, %v112
    %114 = vrot.lane.b32.xlu0 %v113, 126
    %v115 = vpop.permute.xlu0 %114
    %v116 = vrot.slane %v115, 4
    %vm117 = vcmask 1031168
    %v118 = vsel %vm117, %v115, %v116
    %120 = vst.msk [vmem:[#allocation2 + $0x8] sm:$0x33] %vm83, %v118
    %v121 = vld [vmem:[#allocation3] sm:$0xf]
    %v123 = vcombine.low %v121, %v121
    %v125 = vunpack.c.l.s4 1983009808
    %v126 = vunpack.c.0.s8 %v125
    %v127 = vlaneseq
    %v128 = vshrl.u32 %v127, 7
    %v129 = vsub.s32 %v126, %v128
    %v130 = vrot.slane %v123, %v129
    %131 = vrot.lane.b32.xlu0 %v130, 112
    %v132 = vpop.permute.xlu0 %131
    %v133 = vrot.slane %v132, 4
    %vm134 = vcmask 916480
    %v135 = vsel %vm134, %v132, %v133
    %137 = vst.msk [vmem:[#allocation2 + $0x8] sm:$0xcc] %vm103, %v135
    %v138 = vld [vmem:[#allocation3] sm:$0xf]
    %v141 = vunpack.c.l.s4 1983009808
    %v142 = vunpack.c.0.s8 %v141
    %v143 = vlaneseq
    %v144 = vshrl.u32 %v143, 7
    %v145 = vsub.s32 %v142, %v144
    %v146 = vrot.slane %v138, %v145
    %147 = vrot.lane.b32.xlu0 %v146, 111
    %v148 = vpop.permute.xlu0 %147
    %v149 = vrot.slane %v148, 4
    %vm150 = vcmask 908288
    %v151 = vsel %vm150, %v148, %v149
    %153 = vst.msk [vmem:[#allocation2 + $0x10] sm:$0x33] %vm83, %v151
    %v154 = vld [vmem:[#allocation3] sm:$0xf]
    %v156 = vcombine.low %v154, %v154
    %v158 = vunpack.c.l.s4 1983009808
    %v159 = vunpack.c.0.s8 %v158
    %v160 = vlaneseq
    %v161 = vshrl.u32 %v160, 7
    %v162 = vsub.s32 %v159, %v161
    %v163 = vrot.slane %v156, %v162
    %164 = vrot.lane.b32.xlu0 %v163, 110
    %v165 = vpop.permute.xlu0 %164
    %v166 = vrot.slane %v165, 4
    %vm167 = vcmask 900096
    %v168 = vsel %vm167, %v165, %v166
    %170 = vst.msk [vmem:[#allocation2 + $0x10] sm:$0xcc] %vm103, %v168
    %v171 = vld [vmem:[#allocation3] sm:$0xf]
    %v174 = vunpack.c.l.s4 1983009808
    %v175 = vunpack.c.0.s8 %v174
    %v176 = vlaneseq
    %v177 = vshrl.u32 %v176, 7
    %v178 = vsub.s32 %v175, %v177
    %v179 = vrot.slane %v171, %v178
    %180 = vrot.lane.b32.xlu0 %v179, 96
    %v181 = vpop.permute.xlu0 %180
    %v182 = vrot.slane %v181, 4
    %vm183 = vcmask 785408
    %v184 = vsel %vm183, %v181, %v182
    %186 = vst.msk [vmem:[#allocation2 + $0x18] sm:$0x33] %vm83, %v184
    %v187 = vld [vmem:[#allocation3] sm:$0x3f]
    %v189 = vcombine.low %v187, %v187
    %v191 = vunpack.c.l.s4 1983009808
    %v192 = vunpack.c.0.s8 %v191
    %v193 = vlaneseq
    %v194 = vshrl.u32 %v193, 7
    %v195 = vsub.s32 %v192, %v194
    %v196 = vrot.slane %v189, %v195
    %v198 = vunpack.c.l.s4 1983009808
    %v199 = vunpack.c.0.s8 %v198
    %v200 = vlaneseq
    %v201 = vshrl.u32 %v200, 7
    %v202 = vsub.s32 %v199, %v201
    %v203 = vrot.slane %v187, %v202
    %204 = vrot.lane.b32.xlu0 %v196, 95
    %v205 = vpop.permute.xlu0 %204
    %206 = vrot.lane.b32.xlu0 %v203, 95
    %v207 = vpop.permute.xlu0 %206
    %v208 = vrot.slane %v205, 4
    %v209 = vrot.slane %v207, 4
    %vm210 = vcmask 1043456
    %v211 = vsel %vm210, %v208, %v209
    %vm212 = vcmask 777216
    %v213 = vsel %vm212, %v205, %v211
    %215 = vst.msk [vmem:[#allocation2 + $0x18] sm:$0xcc] %vm103, %v213
    %v216 = vld [vmem:[#allocation3] sm:$0x3f]
    %v218 = vcombine.high %v216, %v216
    %v220 = vunpack.c.l.s4 1983009808
    %v221 = vunpack.c.0.s8 %v220
    %v222 = vlaneseq
    %v223 = vshrl.u32 %v222, 7
    %v224 = vsub.s32 %v221, %v223
    %v225 = vrot.slane %v216, %v224
    %v227 = vunpack.c.l.s4 1983009808
    %v228 = vunpack.c.0.s8 %v227
    %v229 = vlaneseq
    %v230 = vshrl.u32 %v229, 7
    %v231 = vsub.s32 %v228, %v230
    %v232 = vrot.slane %v218, %v231
    %233 = vrot.lane.b32.xlu0 %v225, 94
    %v234 = vpop.permute.xlu0 %233
    %235 = vrot.lane.b32.xlu0 %v232, 94
    %v236 = vpop.permute.xlu0 %235
    %v237 = vrot.slane %v234, 4
    %v238 = vrot.slane %v236, 4
    %v239 = vsel %vm210, %v237, %v238
    %vm240 = vcmask 769024
    %v241 = vsel %vm240, %v234, %v239
    %243 = vst.msk [vmem:[#allocation2 + $0x20] sm:$0x33] %vm83, %v241
    %v244 = vld [vmem:[#allocation6] sm:$0xf]
    %v245 = vld [vmem:[#allocation2] sm:$0xff]
    %v246 = vld [vmem:[#allocation2 + $0x8] sm:$0xff]
    %v247 = vld [vmem:[#allocation2 + $0x10] sm:$0xff]
    %v248 = vld [vmem:[#allocation2 + $0x18] sm:$0xff]
    %v249 = vld [vmem:[#allocation2 + $0x20] sm:$0x33]
    %v255 = vunpack.c.l.b16 %v245
    %v256 = vunpack.c.h.b16 %v245
    %v257 = vunpack.c.l.b16 %v246
    %v258 = vunpack.c.h.b16 %v246
    %v259 = vunpack.c.l.b16 %v247
    %v260 = vunpack.c.h.b16 %v247
    %v261 = vunpack.c.l.b16 %v248
    %v262 = vunpack.c.h.b16 %v248
    %v263 = vunpack.c.l.b16 %v249
    %v264 = vunpack.c.h.b16 %v249
    %v265 = vpack.c.b16 %v257, %v255
    %v266 = vpack.c.b16 %v258, %v256
    %v267 = vpack.c.b16 %v261, %v259
    %v268 = vpack.c.b16 %v262, %v260
    %v269 = vpack.c.b16 %v263, %v263
    %v270 = vpack.c.b16 %v264, %v264
    %vm275 = vcmask 293888
    %v277 = vsel %vm275, %v244, 0
    %v280 = vsel %vm81, %v269, 0
    %v283 = vsel %vm81, %v270, 0
    %285 = vmatprep.subr.bf16.mxu0 %v266
    %286 = vmatpush1.bf16.msra.mxu0 %v265
    %287 = vmatprep.subr.bf16.mxu0 %v268
    %288 = vmatpush1.bf16.msra.mxu0 %v267
    %289 = vmatprep.subr.bf16.mxu0 %v283
    %290 = vmatpush1.bf16.msra.mxu0 %v280
    %291 = vmatprep.subr.bf16.mxu0 0
    %292 = vmatpush1.bf16.msra.mxu0 0
    %293 = vmatprep.subr.bf16.mxu0 0
    %294 = vmatpush1.bf16.msra.mxu0 0
    %295 = vmatprep.subr.bf16.mxu0 0
    %296 = vmatpush1.bf16.msra.mxu0 0
    %297 = vmatprep.subr.bf16.mxu0 0
    %298 = vmatpush1.bf16.msra.mxu0 0
    %299 = vmatprep.subr.bf16.mxu0 0
    %300 = vmatpush1.bf16.msra.mxu0 0
    %301 = vmatprep.subr.bf16.mxu0 0
    %302 = vmatpush1.bf16.msra.mxu0 0
    %303 = vmatprep.subr.bf16.mxu0 0
    %304 = vmatpush1.bf16.msra.mxu0 0
    %305 = vmatprep.subr.bf16.mxu0 0
    %306 = vmatpush1.bf16.msra.mxu0 0
    %307 = vmatprep.subr.bf16.mxu0 0
    %308 = vmatpush1.bf16.msra.mxu0 0
    %309 = vmatprep.subr.bf16.mxu0 0
    %310 = vmatpush1.bf16.msra.mxu0 0
    %311 = vmatprep.subr.bf16.mxu0 0
    %312 = vmatpush1.bf16.msra.mxu0 0
    %313 = vmatprep.subr.bf16.mxu0 0
    %314 = vmatpush1.bf16.msra.mxu0 0
    %315 = vmatprep.subr.bf16.mxu0 0
    %316 = vmatpush1.bf16.msra.mxu0 0
    %317 = vmatprep.mubr.bf16.mxu0 0
    %318 = vmatmul.mubr.bf16.gmra.mrb[0].mxu0 %v277
    %v319 = vpop.f32.mrb[0].mxu0
    %v320 = vadd.f32 0.0, %v319
    %v321 = vpop.f32.mrb[0].mxu0
    %v322 = vadd.f32 0.0, %v321
    %v323 = vpop.f32.mrb[0].mxu0
    %v324 = vpop.f32.mrb[0].mxu0
    %325 = vdwg.mxu0
    %v326 = vpack.c.bf16 %v320, %v320
    %v327 = vpack.c.bf16 %v322, %v322
    %v330 = vunpack.c.l.b16 %v326
    %v331 = vunpack.c.l.b16 %v327
    %v332 = vpack.c.b16 %v331, %v330
    %vm334 = vcmask 1043456
    %vm335 = vcmask 785412
    %vm336 = vmor %vm335, %vm334
    %337 = vst.msk [vmem:[#allocation8] sm:$0xff] %vm336, %v332
    %v338 = vsel %vm69, %v320, 0.0
    %v339 = vsel %vm70, %v322, 0.0
    %vm340 = vcmask 785408
    %v341 = vsel %vm340, %v339, 0.0
    %v342 = vadd.f32 %v338, %v341
    %343 = vadd.xlane.f32.xlu0 %v342
    %v344 = vpop.xlane.xlu0 %343
    %v345 = vadd.f32 %v344, 0.0
    %v346 = vmul.f32 %v320, %v320
    %v347 = vmul.f32 %v322, %v322
    %v348 = vsel %vm69, %v346, 0.0
    %v349 = vsel %vm70, %v347, 0.0
    %v350 = vsel %vm340, %v349, 0.0
    %v351 = vadd.f32 %v348, %v350
    %352 = vadd.xlane.f32.xlu0 %v351
    %v353 = vpop.xlane.xlu0 %352
    %v354 = vadd.f32 %v353, 0.0
    %s355 = scalar_lea.vmem [#allocation3], 6
    %v356 = vld [vmem:[%s355] sm:$0xf]
    %v359 = vunpack.c.l.s4 1983009808
    %v360 = vunpack.c.0.s8 %v359
    %v361 = vlaneseq
    %v362 = vshrl.u32 %v361, 7
    %v363 = vsub.s32 %v360, %v362
    %v364 = vrot.slane %v356, %v363
    %366 = vst.msk [vmem:[#allocation2] sm:$0x33] %vm83, %v364
    %v367 = vld [vmem:[%s355] sm:$0xf]
    %v369 = vcombine.low %v367, %v367
    %v371 = vunpack.c.l.s4 1983009808
    %v372 = vunpack.c.0.s8 %v371
    %v373 = vlaneseq
    %v374 = vshrl.u32 %v373, 7
    %v375 = vsub.s32 %v372, %v374
    %v376 = vrot.slane %v369, %v375
    %377 = vrot.lane.b32.xlu0 %v376, 127
    %v378 = vpop.permute.xlu0 %377
    %v379 = vrot.slane %v378, 4
    %v380 = vsel %vm98, %v378, %v379
    %382 = vst.msk [vmem:[#allocation2] sm:$0xcc] %vm103, %v380
    %v383 = vld [vmem:[%s355] sm:$0xf]
    %v386 = vunpack.c.l.s4 1983009808
    %v387 = vunpack.c.0.s8 %v386
    %v388 = vlaneseq
    %v389 = vshrl.u32 %v388, 7
    %v390 = vsub.s32 %v387, %v389
    %v391 = vrot.slane %v383, %v390
    %392 = vrot.lane.b32.xlu0 %v391, 126
    %v393 = vpop.permute.xlu0 %392
    %v394 = vrot.slane %v393, 4
    %v395 = vsel %vm117, %v393, %v394
    %397 = vst.msk [vmem:[#allocation2 + $0x8] sm:$0x33] %vm83, %v395
    %v398 = vld [vmem:[%s355] sm:$0xf]
    %v400 = vcombine.low %v398, %v398
    %v402 = vunpack.c.l.s4 1983009808
    %v403 = vunpack.c.0.s8 %v402
    %v404 = vlaneseq
    %v405 = vshrl.u32 %v404, 7
    %v406 = vsub.s32 %v403, %v405
    %v407 = vrot.slane %v400, %v406
    %408 = vrot.lane.b32.xlu0 %v407, 112
    %v409 = vpop.permute.xlu0 %408
    %v410 = vrot.slane %v409, 4
    %v411 = vsel %vm134, %v409, %v410
    %413 = vst.msk [vmem:[#allocation2 + $0x8] sm:$0xcc] %vm103, %v411
    %v414 = vld [vmem:[%s355] sm:$0xf]
    %v417 = vunpack.c.l.s4 1983009808
    %v418 = vunpack.c.0.s8 %v417
    %v419 = vlaneseq
    %v420 = vshrl.u32 %v419, 7
    %v421 = vsub.s32 %v418, %v420
    %v422 = vrot.slane %v414, %v421
    %423 = vrot.lane.b32.xlu0 %v422, 111
    %v424 = vpop.permute.xlu0 %423
    %v425 = vrot.slane %v424, 4
    %v426 = vsel %vm150, %v424, %v425
    %428 = vst.msk [vmem:[#allocation2 + $0x10] sm:$0x33] %vm83, %v426
    %v429 = vld [vmem:[%s355] sm:$0xf]
    %v431 = vcombine.low %v429, %v429
    %v433 = vunpack.c.l.s4 1983009808
    %v434 = vunpack.c.0.s8 %v433
    %v435 = vlaneseq
    %v436 = vshrl.u32 %v435, 7
    %v437 = vsub.s32 %v434, %v436
    %v438 = vrot.slane %v431, %v437
    %439 = vrot.lane.b32.xlu0 %v438, 110
    %v440 = vpop.permute.xlu0 %439
    %v441 = vrot.slane %v440, 4
    %v442 = vsel %vm167, %v440, %v441
    %444 = vst.msk [vmem:[#allocation2 + $0x10] sm:$0xcc] %vm103, %v442
    %v445 = vld [vmem:[%s355] sm:$0xf]
    %v448 = vunpack.c.l.s4 1983009808
    %v449 = vunpack.c.0.s8 %v448
    %v450 = vlaneseq
    %v451 = vshrl.u32 %v450, 7
    %v452 = vsub.s32 %v449, %v451
    %v453 = vrot.slane %v445, %v452
    %454 = vrot.lane.b32.xlu0 %v453, 96
    %v455 = vpop.permute.xlu0 %454
    %v456 = vrot.slane %v455, 4
    %v457 = vsel %vm183, %v455, %v456
    %459 = vst.msk [vmem:[#allocation2 + $0x18] sm:$0x33] %vm83, %v457
    %v460 = vld [vmem:[%s355] sm:$0x3f]
    %v462 = vcombine.low %v460, %v460
    %v464 = vunpack.c.l.s4 1983009808
    %v465 = vunpack.c.0.s8 %v464
    %v466 = vlaneseq
    %v467 = vshrl.u32 %v466, 7
    %v468 = vsub.s32 %v465, %v467
    %v469 = vrot.slane %v462, %v468
    %v471 = vunpack.c.l.s4 1983009808
    %v472 = vunpack.c.0.s8 %v471
    %v473 = vlaneseq
    %v474 = vshrl.u32 %v473, 7
    %v475 = vsub.s32 %v472, %v474
    %v476 = vrot.slane %v460, %v475
    %477 = vrot.lane.b32.xlu0 %v469, 95
    %v478 = vpop.permute.xlu0 %477
    %479 = vrot.lane.b32.xlu0 %v476, 95
    %v480 = vpop.permute.xlu0 %479
    %v481 = vrot.slane %v478, 4
    %v482 = vrot.slane %v480, 4
    %v483 = vsel %vm210, %v481, %v482
    %v484 = vsel %vm212, %v478, %v483
    %486 = vst.msk [vmem:[#allocation2 + $0x18] sm:$0xcc] %vm103, %v484
    %v487 = vld [vmem:[%s355] sm:$0x3f]
    %v489 = vcombine.high %v487, %v487
    %v491 = vunpack.c.l.s4 1983009808
    %v492 = vunpack.c.0.s8 %v491
    %v493 = vlaneseq
    %v494 = vshrl.u32 %v493, 7
    %v495 = vsub.s32 %v492, %v494
    %v496 = vrot.slane %v487, %v495
    %v498 = vunpack.c.l.s4 1983009808
    %v499 = vunpack.c.0.s8 %v498
    %v500 = vlaneseq
    %v501 = vshrl.u32 %v500, 7
    %v502 = vsub.s32 %v499, %v501
    %v503 = vrot.slane %v489, %v502
    %504 = vrot.lane.b32.xlu0 %v496, 94
    %v505 = vpop.permute.xlu0 %504
    %506 = vrot.lane.b32.xlu0 %v503, 94
    %v507 = vpop.permute.xlu0 %506
    %v508 = vrot.slane %v505, 4
    %v509 = vrot.slane %v507, 4
    %v510 = vsel %vm210, %v508, %v509
    %v511 = vsel %vm240, %v505, %v510
    %513 = vst.msk [vmem:[#allocation2 + $0x20] sm:$0x33] %vm83, %v511
    %v514 = vld [vmem:[#allocation6] sm:$0xf]
    %v515 = vld [vmem:[#allocation2] sm:$0xff]
    %v516 = vld [vmem:[#allocation2 + $0x8] sm:$0xff]
    %v517 = vld [vmem:[#allocation2 + $0x10] sm:$0xff]
    %v518 = vld [vmem:[#allocation2 + $0x18] sm:$0xff]
    %v519 = vld [vmem:[#allocation2 + $0x20] sm:$0x33]
    %v525 = vunpack.c.l.b16 %v515
    %v526 = vunpack.c.h.b16 %v515
    %v527 = vunpack.c.l.b16 %v516
    %v528 = vunpack.c.h.b16 %v516
    %v529 = vunpack.c.l.b16 %v517
    %v530 = vunpack.c.h.b16 %v517
    %v531 = vunpack.c.l.b16 %v518
    %v532 = vunpack.c.h.b16 %v518
    %v533 = vunpack.c.l.b16 %v519
    %v534 = vunpack.c.h.b16 %v519
    %v535 = vpack.c.b16 %v527, %v525
    %v536 = vpack.c.b16 %v528, %v526
    %v537 = vpack.c.b16 %v531, %v529
    %v538 = vpack.c.b16 %v532, %v530
    %v539 = vpack.c.b16 %v533, %v533
    %v540 = vpack.c.b16 %v534, %v534
    %v546 = vsel %vm275, %v514, 0
    %v549 = vsel %vm81, %v539, 0
    %v552 = vsel %vm81, %v540, 0
    %554 = vmatprep.subr.bf16.mxu0 %v536
    %555 = vmatpush1.bf16.msra.mxu0 %v535
    %556 = vmatprep.subr.bf16.mxu0 %v538
    %557 = vmatpush1.bf16.msra.mxu0 %v537
    %558 = vmatprep.subr.bf16.mxu0 %v552
    %559 = vmatpush1.bf16.msra.mxu0 %v549
    %560 = vmatprep.subr.bf16.mxu0 0
    %561 = vmatpush1.bf16.msra.mxu0 0
    %562 = vmatprep.subr.bf16.mxu0 0
    %563 = vmatpush1.bf16.msra.mxu0 0
    %564 = vmatprep.subr.bf16.mxu0 0
    %565 = vmatpush1.bf16.msra.mxu0 0
    %566 = vmatprep.subr.bf16.mxu0 0
    %567 = vmatpush1.bf16.msra.mxu0 0
    %568 = vmatprep.subr.bf16.mxu0 0
    %569 = vmatpush1.bf16.msra.mxu0 0
    %570 = vmatprep.subr.bf16.mxu0 0
    %571 = vmatpush1.bf16.msra.mxu0 0
    %572 = vmatprep.subr.bf16.mxu0 0
    %573 = vmatpush1.bf16.msra.mxu0 0
    %574 = vmatprep.subr.bf16.mxu0 0
    %575 = vmatpush1.bf16.msra.mxu0 0
    %576 = vmatprep.subr.bf16.mxu0 0
    %577 = vmatpush1.bf16.msra.mxu0 0
    %578 = vmatprep.subr.bf16.mxu0 0
    %579 = vmatpush1.bf16.msra.mxu0 0
    %580 = vmatprep.subr.bf16.mxu0 0
    %581 = vmatpush1.bf16.msra.mxu0 0
    %582 = vmatprep.subr.bf16.mxu0 0
    %583 = vmatpush1.bf16.msra.mxu0 0
    %584 = vmatprep.subr.bf16.mxu0 0
    %585 = vmatpush1.bf16.msra.mxu0 0
    %586 = vmatprep.mubr.bf16.mxu0 0
    %587 = vmatmul.mubr.bf16.gmra.mrb[0].mxu0 %v546
    %v588 = vpop.f32.mrb[0].mxu0
    %v589 = vadd.f32 0.0, %v588
    %v590 = vpop.f32.mrb[0].mxu0
    %v591 = vadd.f32 0.0, %v590
    %v592 = vpop.f32.mrb[0].mxu0
    %v593 = vpop.f32.mrb[0].mxu0
    %594 = vdwg.mxu0
    %v595 = vpack.c.bf16 %v589, %v589
    %v596 = vpack.c.bf16 %v591, %v591
    %v599 = vunpack.c.l.b16 %v595
    %v600 = vunpack.c.l.b16 %v596
    %v601 = vpack.c.b16 %v600, %v599
    %s603 = scalar_lea.vmem [#allocation8], 8
    %604 = vst.msk [vmem:[%s603] sm:$0xff] %vm336, %v601
    %v605 = vsel %vm69, %v589, 0.0
    %v606 = vsel %vm70, %v591, 0.0
    %v607 = vsel %vm340, %v606, 0.0
    %v608 = vadd.f32 %v605, %v607
    %609 = vadd.xlane.f32.xlu0 %v608
    %v610 = vpop.xlane.xlu0 %609
    %v611 = vadd.f32 %v345, %v610
    %v612 = vmul.f32 %v589, %v589
    %v613 = vmul.f32 %v591, %v591
    %v614 = vsel %vm69, %v612, 0.0
    %v615 = vsel %vm70, %v613, 0.0
    %v616 = vsel %vm340, %v615, 0.0
    %v617 = vadd.f32 %v614, %v616
    %618 = vadd.xlane.f32.xlu0 %v617
    %v619 = vpop.xlane.xlu0 %618
    %v620 = vadd.f32 %v354, %v619
    %vm621 = vcmask 7168
    %622 = vst.msk [vmem:[%s3] sm:$0xff] %vm621, %v611
    %623 = vst.msk [vmem:[%s4] sm:$0xff] %vm621, %v620
    // Predicated region
    $region18: #{tpu_custom_call.1} parent=1 // pred_check
      _
    $region19: #{tpu_custom_call.1} parent=1 // pred_check_branch
      %625 = sbr.rel (0) target = $region21
    $region20: #{tpu_custom_call.1} parent=1 // pred_region
      %s627 = ssub.s32 256, 256
      %628 = vsyncadd [#allocation5], %s627
      %s629 = sshll.u32 [#allocation8], 4
      %s630 = int_to_ptr.vmem [resolvable:$true] %s629
      %635 = dma.vmem_to_hbm [thread:$0]  %s630, 256, %s2, [#allocation5], 128, 128, 8
    $region21: #{tpu_custom_call.1} parent=1 // pred_fallthru
      _
    // Predicated region
    $region22: #{tpu_custom_call.1} parent=1 // pred_check
      _
    $region23: #{tpu_custom_call.1} parent=1 // pred_check_branch
      %637 = sbr.rel (0) target = $region25
    $region24: #{tpu_custom_call.1} parent=1 // pred_region
      _
    $region25: #{tpu_custom_call.1} parent=1 // pred_fallthru
      _
    // Predicated region
    $region26: #{tpu_custom_call.1} parent=1 // pred_check
      _
    $region27: #{tpu_custom_call.1} parent=1 // pred_check_branch
      %639 = sbr.rel (0) target = $region29
    $region28: #{tpu_custom_call.1} parent=1 // pred_region
      _
    $region29: #{tpu_custom_call.1} parent=1 // pred_fallthru
      _
    // Predicated region
    $region30: #{tpu_custom_call.1} parent=1 // pred_check
      _
    $region31: #{tpu_custom_call.1} parent=1 // pred_check_branch
      %641 = sbr.rel (0) target = $region33
    $region32: #{tpu_custom_call.1} parent=1 // pred_region
      %642 = dma.done [#allocation5], 256
    $region33: #{tpu_custom_call.1} parent=1 // pred_fallthru
      _
    // Predicated region
    $region34: #{tpu_custom_call.1} parent=1 // pred_check
      _
    $region35: #{tpu_custom_call.1} parent=1 // pred_check_branch
      %644 = sbr.rel (0) target = $region37
    $region36: #{tpu_custom_call.1} parent=1 // pred_region
      _
    $region37: #{tpu_custom_call.1} parent=1 // pred_fallthru
      _
    // Predicated region
    $region38: #{tpu_custom_call.1} parent=1 // pred_check
      _
    $region39: #{tpu_custom_call.1} parent=1 // pred_check_branch
      %646 = sbr.rel (0) target = $region41
    $region40: #{tpu_custom_call.1} parent=1 // pred_region
      _
    $region41: #{tpu_custom_call.1} parent=1 // pred_fallthru
      _
    %647 = vsyncpa [#allocation4], 1
    %648 = vsyncpa [#allocation7], 1
    %649 = vsyncpa [#allocation5], 1

</llo_original>
